<compile_context>
chip_gen: v5e
topology: v5e:2x2
jax: 0.10.0
libtpu: 0.0.40
codegen_flags: <defaults>
</compile_context>

<pallas_src>
import jax
import jax.numpy as jnp
from jax import lax
from jax.experimental import pallas as pl
from jax.experimental.pallas import tpu as pltpu

LANES = 128      # vreg lane width
SUBLANES = 8     # f32 vreg sublane width


def _cdiv(a, b):
    return (a + b - 1) // b


def _round_up(a, m):
    return _cdiv(a, m) * m


def _bce_partial(x, y, row_off, full_rows, rem_lanes, masked):
    """Per-(sublane, lane) partial sums of elementwise BCE-with-logits on one slab.

    Pure VPU/EUP work (no cross-lane XLU traffic in the hot loop); returns (8,128) f32.
    """
    x = x.astype(jnp.float32)
    y = y.astype(jnp.float32)
    # Numerically stable BCE with logits (matches torch.nn.BCEWithLogitsLoss):
    #   l = max(x, 0) - x*y + log1p(exp(-|x|))
    elem = jnp.maximum(x, 0.0) - x * y + jnp.log1p(jnp.exp(-jnp.abs(x)))
    if masked:
        # Ragged tail: zero out rows/lanes beyond the valid element count.  This also
        # neutralizes whatever a partial last block read out-of-bounds.
        gr = row_off + lax.broadcasted_iota(jnp.int32, elem.shape, 0)
        valid = gr < full_rows
        if rem_lanes:
            gl = lax.broadcasted_iota(jnp.int32, elem.shape, 1)
            valid = valid | ((gr == full_rows) & (gl < rem_lanes))
        elem = jnp.where(valid, elem, 0.0)
    return jnp.sum(elem.reshape(-1, SUBLANES, LANES), axis=0)


def _make_kernel(*, tr, chunk, g_inner, full_rows, rem_lanes, has_ragged):
    n_chunks = tr // chunk
    if n_chunks <= 8:
        unroll = True
    elif n_chunks % 4 == 0:
        unroll = 4
    elif n_chunks % 2 == 0:
        unroll = 2
    else:
        unroll = 1

    def block_sum(x_ref, y_ref, row0, masked):
        if n_chunks == 1:
            return _bce_partial(x_ref[...], y_ref[...], row0,
                                full_rows, rem_lanes, masked)

        def body(k, acc):
            r = pl.multiple_of(k * chunk, chunk)
            xc = x_ref[pl.ds(r, chunk), :]
            yc = y_ref[pl.ds(r, chunk), :]
            return acc + _bce_partial(xc, yc, row0 + r,
                                      full_rows, rem_lanes, masked)

        return lax.fori_loop(0, n_chunks, body,
                             jnp.zeros((SUBLANES, LANES), jnp.float32),
                             unroll=unroll)

    def kernel(x_ref, y_ref, o_ref):
        c = pl.program_id(0)      # core axis (size NC)
        i = pl.program_id(1)      # reduction axis; output block is resident across it

        @pl.when(i == 0)
        def _init():
            o_ref[...] = jnp.zeros_like(o_ref)

        row0 = (c * g_inner + i) * tr
        if not has_ragged:
            o_ref[...] += block_sum(x_ref, y_ref, row0, masked=False)
        else:
            # Only blocks straddling the end of the data pay the mask cost.
            block_full = (row0 + tr) <= full_rows

            @pl.when(block_full)
            def _full():
                o_ref[...] += block_sum(x_ref, y_ref, row0, masked=False)

            @pl.when(jnp.logical_not(block_full))
            def _ragged():
                o_ref[...] += block_sum(x_ref, y_ref, row0, masked=True)

    return kernel


def semantics_loss(semantic_mask1, logits0):
    """semantic_mask1: (B, H, W) targets in [0,1] (bf16 is exact for binary masks).
       logits0:        (B, 1, H, W) raw logits (== logits[0] of the PyTorch module)."""
    B, C, H, W = logits0.shape
    assert C == 1, "SemanticsLoss squeezes a singleton channel dim"
    assert semantic_mask1.shape == (B, H, W)

    try:
        kind = jax.devices()[0].device_kind.lower()
    except Exception:
        kind = ""
    is_v7 = ("v7" in kind) or ("tpu7" in kind)

    # Per-generation knobs: real 2-TensorCore split + 64 MiB VMEM budget on v7x,
    # single core + bigger blocks on v5e/v6e (128 MiB VMEM).
    NC = 2 if is_v7 else 1
    MAX_BLOCK_ROWS = 8192 if is_v7 else 16384

    N = B * H * W
    full_rows, rem_lanes = divmod(N, LANES)
    rows = full_rows + (1 if rem_lanes else 0)   # physical rows of the (rows,128) view

    def plan(nc):
        rpc = _cdiv(rows, nc)                     # rows per core
        g = max(1, _cdiv(rpc, MAX_BLOCK_ROWS))    # blocks per core
        t = _round_up(_cdiv(rpc, g), SUBLANES)    # rows per block
        return g, t

    g_inner, tr = plan(NC)
    if NC > 1 and (NC * g_inner - 1) * tr >= rows:
        NC = 1                                    # too small to split across cores
        g_inner, tr = plan(NC)
    chunk = max(cc for cc in (8, 16, 32, 64) if tr % cc == 0)
    has_ragged = (NC * g_inner * tr != rows) or (rem_lanes != 0)

    # Lane-dense (rows, 128) view.  For contiguous inputs this reshape is metadata-only
    # (no HBM copy) whenever B*H*W is a multiple of 128 -- the common case.
    x_flat = logits0.reshape(-1)
    y_flat = semantic_mask1.reshape(-1)
    if rem_lanes:
        # TODO(synk): only hit when B*H*W % 128 != 0 -- this pad copies the inputs once.
        # Padded values are irrelevant: the kernel masks every element index >= N.
        pad = rows * LANES - N
        x_flat = jnp.pad(x_flat, (0, pad))
        y_flat = jnp.pad(y_flat, (0, pad))
    x2 = x_flat.reshape(rows, LANES)
    y2 = y_flat.reshape(rows, LANES)

    kernel = _make_kernel(tr=tr, chunk=chunk, g_inner=g_inner,
                          full_rows=full_rows, rem_lanes=rem_lanes,
                          has_ragged=has_ragged)

    block_bytes = tr * LANES * (x2.dtype.itemsize + y2.dtype.itemsize)
    vmem_cap = (48 << 20) if is_v7 else (100 << 20)
    vmem_limit = int(min(vmem_cap, max(32 << 20, 2 * block_bytes + (8 << 20))))

    dim0 = pltpu.CORE_PARALLEL if NC == 2 else pltpu.ARBITRARY

    partials = pl.pallas_call(
        kernel,
        out_shape=jax.ShapeDtypeStruct((NC * SUBLANES, LANES), jnp.float32),
        grid_spec=pltpu.PrefetchScalarGridSpec(
            num_scalar_prefetch=0,
            grid=(NC, g_inner),                   # reduction axis last
            in_specs=[
                pl.BlockSpec((tr, LANES), lambda c, i: (c * g_inner + i, 0)),
                pl.BlockSpec((tr, LANES), lambda c, i: (c * g_inner + i, 0)),
            ],
            out_specs=pl.BlockSpec((SUBLANES, LANES), lambda c, i: (c, 0)),
        ),
        compiler_params=pltpu.CompilerParams(
            dimension_semantics=(dim0, pltpu.ARBITRARY),
            vmem_limit_bytes=vmem_limit,
        ),
    )(x2, y2)

    # Single cross-lane reduce + the 1/(H*W) mean scale, once, outside the hot loop.
    return jnp.sum(partials) * (1.0 / float(H * W))


def _reference_loss(semantic_mask1, logits0):
    # Pure-JAX reference of the PyTorch forward for verification.
    x = logits0[:, 0, :, :].astype(jnp.float32)
    y = semantic_mask1.astype(jnp.float32)
    elem = jnp.maximum(x, 0.0) - x * y + jnp.log1p(jnp.exp(-jnp.abs(x)))
    return jnp.sum(jnp.mean(elem, axis=(1, 2)))


if __name__ == "__main__":
    key = jax.random.PRNGKey(0)
    # Cases exercise: aligned single-chunk path (with row masking), multi-chunk
    # fori_loop path, ragged tail with lane masking, and loop + mask combined.
    cases = [(2, 16, 16), (8, 128, 128), (2, 20, 20), (1, 100, 100)]
    for (B, H, W) in cases:
        key, k1, k2 = jax.random.split(key, 3)
        logits = jax.random.normal(k1, (B, 1, H, W), dtype=jnp.float32)  # NCHW, C=1
        masks_f32 = jax.random.bernoulli(k2, p=0.5, shape=(B, H, W)).astype(jnp.float32)
        masks_bf16 = masks_f32.astype(jnp.bfloat16)   # exact for binary {0,1} targets
        loss = jax.block_until_ready(semantics_loss(masks_bf16, logits))
        ref = _reference_loss(masks_f32, logits)
        assert jnp.allclose(loss, ref, rtol=1e-5, atol=1e-5), ((B, H, W), loss, ref)
    print("KERNEL_OK")
</pallas_src>

<mosaic_0001>
module attributes {stable_mosaic.version = 11 : i64} {
  func.func @kernel(%arg0: i32, %arg1: i32, %arg2: memref<8x128xf32, #tpu.memory_space<vmem>>, %arg3: memref<8x128xbf16, #tpu.memory_space<vmem>>, %arg4: memref<8x128xf32, #tpu.memory_space<vmem>>) attributes {dimension_semantics = [#tpu.dimension_semantics<arbitrary>, #tpu.dimension_semantics<arbitrary>], iteration_bounds = array<i64: 1, 1>, scalar_prefetch = 0 : i64, scratch_operands = 0 : i64, tpu.core_type = #tpu.core_type<tc>, window_params = [{transform_indices = @transform_0, window_bounds = array<i64: 8, 128>}, {transform_indices = @transform_1, window_bounds = array<i64: 8, 128>}, {transform_indices = @transform_2, window_bounds = array<i64: 8, 128>}]} {
    %c0_i32 = arith.constant 0 : i32
    %0 = arith.cmpi eq, %arg1, %c0_i32 : i32
    %1 = arith.extui %0 : i1 to i32
    %c0_i32_0 = arith.constant 0 : i32
    %2 = arith.cmpi ne, %1, %c0_i32_0 : i32
    scf.if %2 {
      %cst = arith.constant 0.000000e+00 : f32
      %13 = vector.broadcast %cst : f32 to vector<8x128xf32>
      %c0 = arith.constant 0 : index
      %c0_4 = arith.constant 0 : index
      %14 = vector.load %arg4[%c0, %c0_4] : memref<8x128xf32, #tpu.memory_space<vmem>>, vector<8x128xf32>
      tpu.vector_store %arg4[%c0, %c0_4], %13 {strides = array<i32>} : memref<8x128xf32, #tpu.memory_space<vmem>>, vector<8x128xf32>,
    } else {
    }
    %c1_i32 = arith.constant 1 : i32
    %3 = arith.muli %arg0, %c1_i32 : i32
    %4 = arith.addi %3, %arg1 : i32
    %c8_i32 = arith.constant 8 : i32
    %5 = arith.muli %4, %c8_i32 : i32
    %c8_i32_1 = arith.constant 8 : i32
    %6 = arith.addi %5, %c8_i32_1 : i32
    %c4_i32 = arith.constant 4 : i32
    %7 = arith.cmpi sle, %6, %c4_i32 : i32
    %8 = arith.extui %7 : i1 to i32
    %c0_i32_2 = arith.constant 0 : i32
    %9 = arith.cmpi ne, %8, %c0_i32_2 : i32
    scf.if %9 {
      %c0 = arith.constant 0 : index
      %c0_4 = arith.constant 0 : index
      %13 = vector.load %arg4[%c0, %c0_4] : memref<8x128xf32, #tpu.memory_space<vmem>>, vector<8x128xf32>
      %c0_5 = arith.constant 0 : index
      %c0_6 = arith.constant 0 : index
      %14 = vector.load %arg2[%c0_5, %c0_6] : memref<8x128xf32, #tpu.memory_space<vmem>>, vector<8x128xf32>
      %c0_7 = arith.constant 0 : index
      %c0_8 = arith.constant 0 : index
      %15 = vector.load %arg3[%c0_7, %c0_8] : memref<8x128xbf16, #tpu.memory_space<vmem>>, vector<8x128xbf16>
      %16 = arith.extf %15 : vector<8x128xbf16> to vector<8x128xf32>
      %cst = arith.constant 0.000000e+00 : f32
      %17 = vector.broadcast %cst : f32 to vector<8x128xf32>
      %18 = arith.maximumf %14, %17 : vector<8x128xf32>
      %19 = arith.mulf %14, %16 : vector<8x128xf32>
      %20 = arith.subf %18, %19 : vector<8x128xf32>
      %21 = math.absf %14 : vector<8x128xf32>
      %cst_9 = arith.constant 0.000000e+00 : f32
      %22 = vector.broadcast %cst_9 : f32 to vector<8x128xf32>
      %23 = arith.subf %22, %21 : vector<8x128xf32>
      %24 = math.exp %23 : vector<8x128xf32>
      %25 = math.log1p %24 : vector<8x128xf32>
      %26 = arith.addf %20, %25 : vector<8x128xf32>
      %27 = vector.shape_cast %26 : vector<8x128xf32> to vector<1x8x128xf32>
      %cst_10 = arith.constant dense<0.000000e+00> : vector<8x128xf32>
      %28 = vector.multi_reduction <add>, %27, %cst_10 [0] : vector<1x8x128xf32> to vector<8x128xf32>
      %29 = arith.addf %13, %28 : vector<8x128xf32>
      %c0_11 = arith.constant 0 : index
      %c0_12 = arith.constant 0 : index
      %30 = vector.load %arg4[%c0_11, %c0_12] : memref<8x128xf32, #tpu.memory_space<vmem>>, vector<8x128xf32>
      tpu.vector_store %arg4[%c0_11, %c0_12], %29 {strides = array<i32>} : memref<8x128xf32, #tpu.memory_space<vmem>>, vector<8x128xf32>,
    } else {
    }
    %true = arith.constant true
    %10 = arith.xori %7, %true : i1
    %11 = arith.extui %10 : i1 to i32
    %c0_i32_3 = arith.constant 0 : i32
    %12 = arith.cmpi ne, %11, %c0_i32_3 : i32
    scf.if %12 {
      %c0 = arith.constant 0 : index
      %c0_4 = arith.constant 0 : index
      %13 = vector.load %arg4[%c0, %c0_4] : memref<8x128xf32, #tpu.memory_space<vmem>>, vector<8x128xf32>
      %c0_5 = arith.constant 0 : index
      %c0_6 = arith.constant 0 : index
      %14 = vector.load %arg2[%c0_5, %c0_6] : memref<8x128xf32, #tpu.memory_space<vmem>>, vector<8x128xf32>
      %c0_7 = arith.constant 0 : index
      %c0_8 = arith.constant 0 : index
      %15 = vector.load %arg3[%c0_7, %c0_8] : memref<8x128xbf16, #tpu.memory_space<vmem>>, vector<8x128xbf16>
      %16 = arith.extf %15 : vector<8x128xbf16> to vector<8x128xf32>
      %cst = arith.constant 0.000000e+00 : f32
      %17 = vector.broadcast %cst : f32 to vector<8x128xf32>
      %18 = arith.maximumf %14, %17 : vector<8x128xf32>
      %19 = arith.mulf %14, %16 : vector<8x128xf32>
      %20 = arith.subf %18, %19 : vector<8x128xf32>
      %21 = math.absf %14 : vector<8x128xf32>
      %cst_9 = arith.constant 0.000000e+00 : f32
      %22 = vector.broadcast %cst_9 : f32 to vector<8x128xf32>
      %23 = arith.subf %22, %21 : vector<8x128xf32>
      %24 = math.exp %23 : vector<8x128xf32>
      %25 = math.log1p %24 : vector<8x128xf32>
      %26 = arith.addf %20, %25 : vector<8x128xf32>
      %27 = tpu.iota {dimensions = array<i32: 0>} : vector<8x128xi32>
      %28 = vector.broadcast %5 : i32 to vector<8x128xi32>
      %29 = arith.addi %28, %27 : vector<8x128xi32>
      %c4_i32_10 = arith.constant 4 : i32
      %30 = vector.broadcast %c4_i32_10 : i32 to vector<8x128xi32>
      %31 = arith.cmpi slt, %29, %30 : vector<8x128xi32>
      %cst_11 = arith.constant 0.000000e+00 : f32
      %32 = vector.broadcast %cst_11 : f32 to vector<8x128xf32>
      %33 = arith.select %31, %26, %32 : vector<8x128xi1>, vector<8x128xf32>
      %34 = vector.shape_cast %33 : vector<8x128xf32> to vector<1x8x128xf32>
      %cst_12 = arith.constant dense<0.000000e+00> : vector<8x128xf32>
      %35 = vector.multi_reduction <add>, %34, %cst_12 [0] : vector<1x8x128xf32> to vector<8x128xf32>
      %36 = arith.addf %13, %35 : vector<8x128xf32>
      %c0_13 = arith.constant 0 : index
      %c0_14 = arith.constant 0 : index
      %37 = vector.load %arg4[%c0_13, %c0_14] : memref<8x128xf32, #tpu.memory_space<vmem>>, vector<8x128xf32>
      tpu.vector_store %arg4[%c0_13, %c0_14], %36 {strides = array<i32>} : memref<8x128xf32, #tpu.memory_space<vmem>>, vector<8x128xf32>,
    } else {
    }
    return
  }
  func.func @transform_0(%arg0: i32, %arg1: i32) -> (i32, i32) {
    %c1_i32 = arith.constant 1 : i32
    %0 = arith.muli %arg0, %c1_i32 : i32
    %1 = arith.addi %0, %arg1 : i32
    %c0_i32 = arith.constant 0 : i32
    %c0_i32_0 = arith.constant 0 : i32
    return %1, %c0_i32 : i32, i32
  }
  func.func @transform_1(%arg0: i32, %arg1: i32) -> (i32, i32) {
    %c1_i32 = arith.constant 1 : i32
    %0 = arith.muli %arg0, %c1_i32 : i32
    %1 = arith.addi %0, %arg1 : i32
    %c0_i32 = arith.constant 0 : i32
    %c0_i32_0 = arith.constant 0 : i32
    return %1, %c0_i32 : i32, i32
  }
  func.func @transform_2(%arg0: i32, %arg1: i32) -> (i32, i32) {
    %c0_i32 = arith.constant 0 : i32
    %c0_i32_0 = arith.constant 0 : i32
    return %arg0, %c0_i32 : i32, i32
  }
}

</mosaic_0001>

<llo_original>
// kernel: tpu_custom_call.1
$region0: #{tpu_custom_call.1}
  #allocation0 [shape = 'u32[]', space=smem, size = 0x4, offset = 0x4, fixed_abs, tag = 'smem constant byte address 0x4 - core index']
  #allocation1 [shape = 'u32[72,128]{1,0:T(1,128)}', space=vmem, size = 0x9000, scoped, tag = 'internal scratch']
  %s0 = inlined_call_operand.hbm [shape: f32[4,128], index: 0, kind: input, shape index: {}]
  %s1 = inlined_call_operand.hbm [shape: bf16[4,128], index: 1, kind: input, shape index: {}]
  %s2 = inlined_call_operand.hbm [shape: f32[8,128], index: 2, kind: output, shape index: {}]
  %s3 = sld [smem:[#allocation0]]
  $region38: #{tpu_custom_call.1} parent=0
    _
  %s5 = ssub.s32 1, %s3
  %s6 = scalar_select 0, %s5, %s3
  $region1: #{tpu_custom_call.1} parent=0
    #allocation2 [shape = 'u8[4096]{0}', space=vmem, size = 0x1000, scoped, tag = 'input window, operand 0, single buffered']
    #allocation3 [shape = 's32[1]{0}', space=sflag, size = 0x4, scoped, tag = 'scoped memory for tpu_custom_call.1']
    #allocation4 [shape = 's32[1]{0}', space=sflag, size = 0x4, scoped, tag = 'scoped memory for tpu_custom_call.1']
    #allocation5 [shape = 'u8[2048]{0}', space=vmem, size = 0x800, scoped, tag = 'input window, operand 1, single buffered']
    #allocation6 [shape = 's32[1]{0}', space=sflag, size = 0x4, scoped, tag = 'scoped memory for tpu_custom_call.1']
    #allocation7 [shape = 'u8[4096]{0}', space=vmem, size = 0x1000, scoped, tag = 'output window, operand 0, single buffered']
    %7 = vsyncpa [#allocation3], 0
    %8 = vsyncpa [#allocation6], 0
    %9 = vsyncpa [#allocation4], 0
    // Predicated region
    $region2: #{tpu_custom_call.1} parent=1 // pred_check
      _
    $region3: #{tpu_custom_call.1} parent=1 // pred_check_branch
      %11 = sbr.rel (0) target = $region5
    $region4: #{tpu_custom_call.1} parent=1 // pred_region
      %s12 = sadd.s32 0, 0
      %s13 = smul.u32 2, %s12
      %s14 = ssub.s32 1, %s13
      %s15 = smul.u32 4, %s14
      %s16 = ssub.s32 8, %s15
      %s17 = sshll.u32 %s16, 4
      %18 = vsyncadd [#allocation3], %s17
      %p19 = scmp.ne.s32.totalorder 0, %s15
      %s20 = smul.addr %s13, 4
      %s21 = scalar_lea.hbm %s0, %s20
      %s22 = smul.u32 4, %s14
      %s23 = sshll.u32 %s21, 4
      %s24 = int_to_ptr.hbm [resolvable:$true] %s23
      %s25 = sshll.u32 [#allocation2], 4
      %s26 = int_to_ptr.vmem [resolvable:$true] %s25
      %s27 = sshll.u32 %s22, 4
      %31 = dma.hbm_to_vmem [thread:$0]  (%p19), %s24, %s27, %s26, [#allocation3], 64, 64, 4
    $region5: #{tpu_custom_call.1} parent=1 // pred_fallthru
      _
    // Predicated region
    $region6: #{tpu_custom_call.1} parent=1 // pred_check
      _
    $region7: #{tpu_custom_call.1} parent=1 // pred_check_branch
      %33 = sbr.rel (0) target = $region9
    $region8: #{tpu_custom_call.1} parent=1 // pred_region
      %s34 = sadd.s32 0, 0
      %s35 = smul.u32 2, %s34
      %s36 = ssub.s32 1, %s35
      %s37 = smul.u32 2, %s36
      %s38 = ssub.s32 4, %s37
      %s39 = sshll.u32 %s38, 4
      %40 = vsyncadd [#allocation6], %s39
      %p41 = scmp.ne.s32.totalorder 0, %s37
      %s42 = smul.addr %s35, 2
      %s43 = scalar_lea.hbm %s1, %s42
      %s44 = smul.u32 2, %s36
      %s45 = sshll.u32 %s43, 4
      %s46 = int_to_ptr.hbm [resolvable:$true] %s45
      %s47 = sshll.u32 [#allocation5], 4
      %s48 = int_to_ptr.vmem [resolvable:$true] %s47
      %s49 = sshll.u32 %s44, 4
      %53 = dma.hbm_to_vmem [thread:$0]  (%p41), %s46, %s49, %s48, [#allocation6], 32, 32, 2
    $region9: #{tpu_custom_call.1} parent=1 // pred_fallthru
      _
    // Predicated region
    $region10: #{tpu_custom_call.1} parent=1 // pred_check
      _
    $region11: #{tpu_custom_call.1} parent=1 // pred_check_branch
      %55 = sbr.rel (0) target = $region13
    $region12: #{tpu_custom_call.1} parent=1 // pred_region
      %57 = dma.done [#allocation3], 128
    $region13: #{tpu_custom_call.1} parent=1 // pred_fallthru
      _
    // Predicated region
    $region14: #{tpu_custom_call.1} parent=1 // pred_check
      _
    $region15: #{tpu_custom_call.1} parent=1 // pred_check_branch
      %59 = sbr.rel (0) target = $region17
    $region16: #{tpu_custom_call.1} parent=1 // pred_region
      %61 = dma.done [#allocation6], 64
    $region17: #{tpu_custom_call.1} parent=1 // pred_fallthru
      _
    %s62 = sadd.s32 0, 0
    %s63 = smul.u32 2, %s62
    %s64 = ssub.s32 1, %s63
    %s65 = smul.u32 4, %s64
    %s66 = sadd.s32 0, 0
    %s67 = smul.u32 2, %s66
    %s68 = ssub.s32 1, %s67
    %s69 = smul.u32 2, %s68
    %p70 = scmp.eq.s32.totalorder 0, 0
    // Predicated region
    $region18: #{tpu_custom_call.1} parent=1 // pred_check
      %p71 = pneg %p70
    $region19: #{tpu_custom_call.1} parent=1 // pred_check_branch
      %73 = sbr.rel (%p71) target = $region21
    $region20: #{tpu_custom_call.1} parent=1 // pred_region
      %74 = vst [vmem:[#allocation7] sm:$0xff] 0.0
    $region21: #{tpu_custom_call.1} parent=1 // pred_fallthru
      _
    %s75 = sadd.s32 0, 0
    %s76 = smul.u32 %s75, 8
    %s77 = sadd.s32 %s76, 8
    %p78 = scmp.le.s32.totalorder %s77, 4
    // Predicated region
    $region22: #{tpu_custom_call.1} parent=1 // pred_check
      %p79 = pneg %p78
    $region23: #{tpu_custom_call.1} parent=1 // pred_check_branch
      %81 = sbr.rel (%p79) target = $region25
    $region24: #{tpu_custom_call.1} parent=1 // pred_region
      %v82 = vld [vmem:[#allocation7] sm:$0xff]
      %v83 = vld [vmem:[#allocation2] sm:$0xff]
      %v84 = vld [vmem:[#allocation5] sm:$0x3]
      %v85 = vld [vmem:[#allocation5 + $0x2] sm:$0x3]
      %v86 = vunpack.c.l.bf16 %v84
      %v87 = vunpack.c.l.bf16 %v85
      %v88 = vmax.f32 %v83, 0.0
      %91 = vst [vmem:[#allocation1] ss:$2 sm:$0xff] %v86
      %s92 = scalar_lea.vmem [#allocation1], 1
      %93 = vst [vmem:[%s92] ss:$2 sm:$0xff] %v87
      %v94 = vld.sshfl [vmem:[#allocation1] sm:$0xff pattern:$0x75316420]
      %v96 = vmul.f32 %v83, %v94
      %v97 = vsub.f32 %v88, %v96
      %v98 = vand.u32 2147483647, %v83
      %v99 = vsub.f32 0.0, %v98
      %v100 = vmul.f32 %v99, 1.442695
      %v101 = vpow.pop %v100
      %v102 = vadd.f32 %v101, 1.0
      %v103 = vlog2.pop %v102
      %v104 = vmul.f32 %v103, 0.6931472
      %v105 = vmul.f32 -0.5, %v101
      %v106 = vadd.f32 %v105, 1.0
      %v107 = vmul.f32 %v106, %v101
      %v108 = vand.u32 2147483647, %v101
      %vm109 = vcmp.lt.f32.partialorder %v108, 0.0004427343
      %v110 = vsel %vm109, %v107, %v104
      %v111 = vadd.f32 %v97, %v110
      %v112 = vadd.f32 %v111, 0.0
      %v113 = vadd.f32 %v82, %v112
      %114 = vst [vmem:[#allocation7] sm:$0xff] %v113
    $region25: #{tpu_custom_call.1} parent=1 // pred_fallthru
      _
    %p115 = scmp.gt.s32.totalorder %s77, 4
    // Predicated region
    $region26: #{tpu_custom_call.1} parent=1 // pred_check
      %p116 = pneg %p115
    $region27: #{tpu_custom_call.1} parent=1 // pred_check_branch
      %118 = sbr.rel (%p116) target = $region29
    $region28: #{tpu_custom_call.1} parent=1 // pred_region
      %v119 = vld [vmem:[#allocation7] sm:$0xff]
      %v120 = vld [vmem:[#allocation2] sm:$0xff]
      %v121 = vld [vmem:[#allocation5] sm:$0x3]
      %v122 = vld [vmem:[#allocation5 + $0x2] sm:$0x3]
      %v123 = vunpack.c.l.bf16 %v121
      %v124 = vunpack.c.l.bf16 %v122
      %v125 = vmax.f32 %v120, 0.0
      %128 = vst [vmem:[#allocation1] ss:$2 sm:$0xff] %v123
      %s129 = scalar_lea.vmem [#allocation1], 1
      %130 = vst [vmem:[%s129] ss:$2 sm:$0xff] %v124
      %v131 = vld.sshfl [vmem:[#allocation1] sm:$0xff pattern:$0x75316420]
      %v133 = vmul.f32 %v120, %v131
      %v134 = vsub.f32 %v125, %v133
      %v135 = vand.u32 2147483647, %v120
      %v136 = vsub.f32 0.0, %v135
      %v137 = vmul.f32 %v136, 1.442695
      %v138 = vpow.pop %v137
      %v139 = vadd.f32 %v138, 1.0
      %v140 = vlog2.pop %v139
      %v141 = vmul.f32 %v140, 0.6931472
      %v142 = vmul.f32 -0.5, %v138
      %v143 = vadd.f32 %v142, 1.0
      %v144 = vmul.f32 %v143, %v138
      %v145 = vand.u32 2147483647, %v138
      %vm146 = vcmp.lt.f32.partialorder %v145, 0.0004427343
      %v147 = vsel %vm146, %v144, %v141
      %v148 = vadd.f32 %v134, %v147
      %v149 = vlaneseq
      %v150 = vshrl.u32 %v149, 7
      %v151 = vstv %s76
      %v152 = vadd.s32 %v151, %v150
      %vm153 = vcmp.lt.s32.totalorder %v152, 4
      %v154 = vsel %vm153, %v148, 0.0
      %v155 = vadd.f32 %v154, 0.0
      %v156 = vadd.f32 %v119, %v155
      %157 = vst [vmem:[#allocation7] sm:$0xff] %v156
    $region29: #{tpu_custom_call.1} parent=1 // pred_fallthru
      _
    // Predicated region
    $region30: #{tpu_custom_call.1} parent=1 // pred_check
      _
    $region31: #{tpu_custom_call.1} parent=1 // pred_check_branch
      %159 = sbr.rel (0) target = $region33
    $region32: #{tpu_custom_call.1} parent=1 // pred_region
      %161 = vsyncadd [#allocation4], 0
      %s163 = sshll.u32 [#allocation7], 4
      %s164 = int_to_ptr.vmem [resolvable:$true] %s163
      %s165 = sshll.u32 %s2, 4
      %s166 = int_to_ptr.hbm [resolvable:$true] %s165
      %168 = dma.vmem_to_hbm [thread:$0]  %s164, 128, %s166, [#allocation4]
    $region33: #{tpu_custom_call.1} parent=1 // pred_fallthru
      _
    // Predicated region
    $region34: #{tpu_custom_call.1} parent=1 // pred_check
      _
    $region35: #{tpu_custom_call.1} parent=1 // pred_check_branch
      %170 = sbr.rel (0) target = $region37
    $region36: #{tpu_custom_call.1} parent=1 // pred_region
      %172 = dma.done [#allocation4], 128
    $region37: #{tpu_custom_call.1} parent=1 // pred_fallthru
      _
    %173 = vsyncpa [#allocation3], 1
    %174 = vsyncpa [#allocation6], 1
    %175 = vsyncpa [#allocation4], 1

</llo_original>
